<compile_context>
chip_gen: v6e
topology: v6e:2x2x1
jax: 0.10.0
libtpu: 0.0.40
codegen_flags: <defaults>
</compile_context>

<pallas_src>
import functools

import jax
import jax.numpy as jnp
from jax.experimental import pallas as pl
from jax.experimental.pallas import tpu as pltpu


def _convnet_kernel(pool, l_pool, tb, k_size, vocab, c, h1, h2,
                    o_wc, o_w1, o_w2, o_b,
                    patch_ref, par_ref, out_ref):
    """One batch tile of the whole forward pass.

    patch_ref: (tb*pool*l_pool, K) int32 -- im2col'd token ids, pre-offset by
               tap*V (padding sentinel == -1).
    par_ref:   (n_rows, 128) f32 -- all parameters packed into one buffer:
               rows [o_wc, o_wc+K*V)      : fused (embedding @ conv-tap) blocks
               rows [o_w1, o_w1+l_pool*C) : w1 (pre-permuted to (l_pool, C))
               rows [o_w2, o_w2+h1)       : w2
               rows o_b .. o_b+4          : b_conv, b1, b2, wo, bo (one per row)
    out_ref:   (tb, 128) f32 -- sigmoid(logit) broadcast along lanes.
    """
    rows = tb * pool * l_pool
    kv = k_size * vocab

    # --- embedding + Conv1d as one MXU matmul --------------------------------
    # one-hot[r, tap*V + v] = (id[r, tap] == tap*V + v); padding (-1) matches
    # nothing, i.e. it "embeds" to zero exactly like Conv1d's zero padding.
    col = jax.lax.broadcasted_iota(jnp.int32, (rows, kv), 1)
    hit = patch_ref[:, 0:1] == col
    for k in range(1, k_size):
        hit = jnp.logical_or(hit, patch_ref[:, k:k + 1] == col)
    # TODO(synk): cast the matmul operands to bf16 on v6e/v7x once K*V grows;
    # the one-hot is exact in bf16 and only w_fused picks up ~1e-3 rounding.
    onehot = hit.astype(jnp.float32)

    w_fused = par_ref[o_wc:o_wc + kv, 0:c]
    b_conv = par_ref[o_b:o_b + 1, 0:c]
    acc = jnp.dot(onehot, w_fused, preferred_element_type=jnp.float32)
    acc = jnp.maximum(acc + b_conv, 0.0)                  # conv bias + ReLU

    # --- MaxPool1d: rows were pre-ordered (b, pool_phase, pooled_pos), so
    # pooling is an elementwise max over the leading `pool` axis (VPU only).
    acc = acc.reshape(tb, pool, l_pool, c)
    pooled = acc[:, 0]
    for p in range(1, pool):
        pooled = jnp.maximum(pooled, acc[:, p])           # (tb, l_pool, c)

    # Flatten in (l_pool, c) order; w1 rows were permuted host-side to match
    # PyTorch's (c, l_pool) flatten, so no in-kernel transpose is needed.
    # TODO(synk): replace this lane-merging reshape with a dot_general over
    # the (l_pool, c) dims if C grows enough for the relayout to matter.
    flat = pooled.reshape(tb, l_pool * c)

    # --- MLP (dropout is an inference-mode identity) --------------------------
    w1 = par_ref[o_w1:o_w1 + l_pool * c, 0:h1]
    b1 = par_ref[o_b + 1:o_b + 2, 0:h1]
    w2 = par_ref[o_w2:o_w2 + h1, 0:h2]
    b2 = par_ref[o_b + 2:o_b + 3, 0:h2]
    wo = par_ref[o_b + 3:o_b + 4, 0:h2]
    bo = par_ref[o_b + 4:o_b + 5, 0:1]

    h = jnp.dot(flat, w1, preferred_element_type=jnp.float32)
    h = jnp.maximum(h + b1, 0.0)
    h = jnp.dot(h, w2, preferred_element_type=jnp.float32)
    h = jnp.maximum(h + b2, 0.0)

    # fc_out (N == 1): VPU broadcast-multiply + lane reduction instead of an
    # MXU matmul with a single output column.
    logit = jnp.sum(h * wo, axis=-1, keepdims=True) + bo
    prob = jax.nn.sigmoid(logit)                          # (tb, 1)
    # TODO(synk): once tb >= 128, pack probabilities lane-dense across batch
    # instead of this 128-lane broadcast store.
    out_ref[...] = jnp.broadcast_to(prob, out_ref.shape)  # lane-dense store


def _round_up(x, m):
    return (x + m - 1) // m * m


def convnet_forward(tokens, params, *, kernel_size, stride, pool,
                    batch_tile=None):
    B, L = tokens.shape
    V, _ = params["embedding"].shape
    C = params["w_conv"].shape[0]
    h1 = params["w1"].shape[1]
    h2 = params["w2"].shape[1]
    pad = kernel_size // 2
    l_conv = (L + 2 * pad - kernel_size) // stride + 1
    l_pool = l_conv // pool
    kv = kernel_size * V

    # Grid: one big tile is ideal on single-TC v5e/v6e; two tiles lets the
    # "parallel" batch axis shard across v7x's two TensorCores at the cost of
    # a single extra grid step elsewhere.
    if batch_tile is None:
        batch_tile = B // 2 if (B % 2 == 0 and (B // 2) % 8 == 0) else B
    tb = batch_tile
    assert B % tb == 0, "batch must be divisible by batch_tile"
    rows = tb * pool * l_pool

    # ---- host-side (cheap integer / one-time) preparation -------------------
    # im2col on token ids, row order (batch, pool_phase, pooled_pos) so the
    # in-kernel maxpool is an elementwise max over a leading axis.  Ids are
    # pre-offset by tap*V so the kernel's one-hot column index is tap*V + id;
    # padding positions become -1 (match nothing == zero embedding == Conv1d
    # zero padding).  Only (rows, K) int32 travel over HBM.
    tokens_pad = jnp.pad(tokens.astype(jnp.int32), ((0, 0), (pad, pad)),
                         constant_values=-1)
    p_idx = jnp.arange(pool)[:, None, None]
    lp_idx = jnp.arange(l_pool)[None, :, None]
    t_idx = jnp.arange(kernel_size)[None, None, :]
    pos = ((lp_idx * pool + p_idx) * stride + t_idx).reshape(-1)
    patch = jnp.take(tokens_pad, pos, axis=1)             # (B, pool*l_pool*K)
    patch = patch.reshape(B, pool, l_pool, kernel_size)
    tap_off = jnp.arange(kernel_size, dtype=jnp.int32) * V
    patch = jnp.where(patch >= 0, patch + tap_off, -1)
    patch = patch.reshape(B * pool * l_pool, kernel_size).astype(jnp.int32)

    # Fold the embedding table into the conv weight so one MXU matmul performs
    # embedding lookup + conv:  (emb @ W_tap)[token] == emb[token] @ W_tap.
    # TODO(synk): for large vocabularies, replace this one-hot-matmul embedding
    # with a scalar-prefetch / DMA gather of embedding rows inside the kernel.
    w_taps = jnp.transpose(params["w_conv"], (2, 1, 0))   # (K, E, C)
    w_fused = jnp.einsum("ve,kec->kvc", params["embedding"], w_taps)
    w_fused = w_fused.reshape(kv, C).astype(jnp.float32)

    # Permute w1 rows from PyTorch's (C, L_pool) flatten order to (L_pool, C).
    w1_perm = params["w1"].reshape(C, l_pool, h1).transpose(1, 0, 2)
    w1_perm = w1_perm.reshape(l_pool * C, h1)

    # Pack every parameter into ONE padded f32 buffer (single DMA, static
    # in-kernel slices).  Matrix sections start on 8-aligned rows; each bias
    # lives on its own row starting at lane 0.
    width = _round_up(max(C, h1, h2), 128)
    o_wc = 0
    o_w1 = _round_up(kv, 8)
    o_w2 = o_w1 + _round_up(l_pool * C, 8)
    o_b = o_w2 + _round_up(h1, 8)
    n_rows = o_b + 8
    packed = jnp.zeros((n_rows, width), jnp.float32)
    packed = packed.at[o_wc:o_wc + kv, :C].set(w_fused)
    packed = packed.at[o_w1:o_w1 + l_pool * C, :h1].set(w1_perm)
    packed = packed.at[o_w2:o_w2 + h1, :h2].set(params["w2"])
    packed = packed.at[o_b, :C].set(params["b_conv"].reshape(-1))
    packed = packed.at[o_b + 1, :h1].set(params["b1"].reshape(-1))
    packed = packed.at[o_b + 2, :h2].set(params["b2"].reshape(-1))
    packed = packed.at[o_b + 3, :h2].set(params["wo"].reshape(-1))
    packed = packed.at[o_b + 4, :1].set(params["bo"].reshape(-1))

    # VMEM budget from actual buffer sizes (double-buffered in/out tiles plus
    # the resident packed params), capped well under v7x's 64 MiB.
    patch_tile_bytes = _round_up(rows, 8) * 128 * 4
    out_tile_bytes = _round_up(tb, 8) * 128 * 4
    param_bytes = int(packed.size) * 4
    vmem_limit = int(min(48 * 1024 * 1024,
                         4 * 1024 * 1024
                         + 4 * (patch_tile_bytes + out_tile_bytes)
                         + 2 * param_bytes))

    kernel = functools.partial(_convnet_kernel, pool, l_pool, tb,
                               kernel_size, V, C, h1, h2,
                               o_wc, o_w1, o_w2, o_b)
    out_full = pl.pallas_call(
        kernel,
        out_shape=jax.ShapeDtypeStruct((B, 128), jnp.float32),
        grid=(B // tb,),
        in_specs=[
            pl.BlockSpec((rows, kernel_size), lambda i: (i, 0)),
            pl.BlockSpec((n_rows, width), lambda i: (0, 0)),
        ],
        out_specs=pl.BlockSpec((tb, 128), lambda i: (i, 0)),
        compiler_params=pltpu.CompilerParams(
            dimension_semantics=("parallel",),
            vmem_limit_bytes=vmem_limit),
    )(patch, packed)
    # Kernel stores a lane-dense (B, 128) tile; the model output is (B, 1).
    return out_full[:, :1]


def _reference_forward(tokens, params, *, kernel_size, stride, pool):
    """Pure-JAX mirror of the PyTorch forward (for the correctness check)."""
    emb = jnp.take(params["embedding"], tokens, axis=0)   # (B, L, E)
    x = jnp.transpose(emb, (0, 2, 1))                     # (B, E, L)
    pad = kernel_size // 2
    x = jnp.pad(x, ((0, 0), (0, 0), (pad, pad)))
    B = x.shape[0]
    C = params["w_conv"].shape[0]
    l_conv = (x.shape[-1] - kernel_size) // stride + 1
    conv = jnp.zeros((B, C, l_conv), jnp.float32)
    for t in range(kernel_size):
        xs = x[:, :, t:t + (l_conv - 1) * stride + 1:stride]
        conv = conv + jnp.einsum("bel,ce->bcl", xs, params["w_conv"][:, :, t])
    conv = jax.nn.relu(conv + params["b_conv"][..., None])
    l_pool = l_conv // pool
    pooled = conv[:, :, :l_pool * pool].reshape(B, C, l_pool, pool).max(axis=-1)
    flat = pooled.reshape(B, C * l_pool)                  # PyTorch view order
    h = jax.nn.relu(flat @ params["w1"] + params["b1"])
    h = jax.nn.relu(h @ params["w2"] + params["b2"])
    return jax.nn.sigmoid(h @ params["wo"] + params["bo"])


if __name__ == "__main__":
    # ---- small, PyTorch-consistent configuration ----------------------------
    vocab_size = 5
    embedding_dim = 8            # Conv1d in_channels
    input_length = 16
    kernels_out_channel = 8
    kernel_size = 3
    stride = 1
    pooling_size = 2
    hidden_layers = (32, 16)
    batch = 16                   # default tiling -> 2 grid steps of 8

    pad = kernel_size // 2
    l_conv = (input_length + 2 * pad - kernel_size) // stride + 1
    l_pool = l_conv // pooling_size
    mlp_in = kernels_out_channel * l_pool                # 8 * 8 = 64

    # ---- deterministic parameter init ---------------------------------------
    root = jax.random.PRNGKey(0)
    keys = jax.random.split(root, 10)
    params = {
        "embedding": jax.random.normal(keys[0], (vocab_size, embedding_dim),
                                       jnp.float32),
        # PyTorch Conv1d weight layout: (C_out, C_in, K)
        "w_conv": jax.random.normal(keys[1], (kernels_out_channel,
                                              embedding_dim, kernel_size),
                                    jnp.float32) * 0.1,
        "b_conv": jax.random.normal(keys[2], (1, kernels_out_channel),
                                    jnp.float32) * 0.1,
        # Linear weights stored as (in, out); w1 rows in PyTorch (C, L_pool)
        # flatten order.
        "w1": jax.random.normal(keys[3], (mlp_in, hidden_layers[0]),
                                jnp.float32) * 0.1,
        "b1": jax.random.normal(keys[4], (1, hidden_layers[0]), jnp.float32) * 0.1,
        "w2": jax.random.normal(keys[5], (hidden_layers[0], hidden_layers[1]),
                                jnp.float32) * 0.1,
        "b2": jax.random.normal(keys[6], (1, hidden_layers[1]), jnp.float32) * 0.1,
        "wo": jax.random.normal(keys[7], (hidden_layers[1], 1), jnp.float32) * 0.1,
        "bo": jax.random.normal(keys[8], (1, 1), jnp.float32) * 0.1,
    }

    # ---- example input: integer token ids (B, L) ----------------------------
    tokens = jax.random.randint(keys[9], (batch, input_length), 0, vocab_size)

    out = convnet_forward(tokens, params, kernel_size=kernel_size,
                          stride=stride, pool=pooling_size)
    out = jax.block_until_ready(out)

    ref = _reference_forward(tokens, params, kernel_size=kernel_size,
                             stride=stride, pool=pooling_size)
    assert out.shape == (batch, 1)
    assert jnp.allclose(out, ref, atol=1e-5, rtol=1e-5)
    # TODO(synk): dropout / BatchNorm branches are inference-mode identities.
    print("KERNEL_OK")
</pallas_src>

<mosaic_0001>
module attributes {stable_mosaic.version = 11 : i64} {
  func.func @_convnet_kernel(%arg0: i32, %arg1: memref<128x3xi32, #tpu.memory_space<vmem>>, %arg2: memref<120x128xf32, #tpu.memory_space<vmem>>, %arg3: memref<8x128xf32, #tpu.memory_space<vmem>>) attributes {dimension_semantics = [#tpu.dimension_semantics<parallel>], iteration_bounds = array<i64: 2>, scalar_prefetch = 0 : i64, scratch_operands = 0 : i64, tpu.core_type = #tpu.core_type<tc>, window_params = [{transform_indices = @transform_0, window_bounds = array<i64: 128, 3>}, {pipeline_mode = #tpu.pipeline_mode<synchronous>, transform_indices = @transform_1, window_bounds = array<i64: 120, 128>}, {transform_indices = @transform_2, window_bounds = array<i64: 8, 128>}]} {
    %0 = tpu.iota {dimensions = array<i32: 1>} : vector<128x15xi32>
    %c0 = arith.constant 0 : index
    %c0_0 = arith.constant 0 : index
    %1 = vector.load %arg1[%c0, %c0_0] : memref<128x3xi32, #tpu.memory_space<vmem>>, vector<128x1xi32>
    %2 = vector.broadcast %1 : vector<128x1xi32> to vector<128x15xi32>
    %3 = arith.cmpi eq, %2, %0 : vector<128x15xi32>
    %c0_1 = arith.constant 0 : index
    %c1 = arith.constant 1 : index
    %4 = vector.load %arg1[%c0_1, %c1] : memref<128x3xi32, #tpu.memory_space<vmem>>, vector<128x1xi32>
    %5 = vector.broadcast %4 : vector<128x1xi32> to vector<128x15xi32>
    %6 = arith.cmpi eq, %5, %0 : vector<128x15xi32>
    %7 = arith.ori %3, %6 : vector<128x15xi1>
    %c0_2 = arith.constant 0 : index
    %c2 = arith.constant 2 : index
    %8 = vector.load %arg1[%c0_2, %c2] : memref<128x3xi32, #tpu.memory_space<vmem>>, vector<128x1xi32>
    %9 = vector.broadcast %8 : vector<128x1xi32> to vector<128x15xi32>
    %10 = arith.cmpi eq, %9, %0 : vector<128x15xi32>
    %11 = arith.ori %7, %10 : vector<128x15xi1>
    %12 = arith.extui %11 : vector<128x15xi1> to vector<128x15xi32>
    %13 = arith.sitofp %12 : vector<128x15xi32> to vector<128x15xf32>
    %c0_3 = arith.constant 0 : index
    %c0_4 = arith.constant 0 : index
    %14 = vector.load %arg2[%c0_3, %c0_4] : memref<120x128xf32, #tpu.memory_space<vmem>>, vector<15x8xf32>
    %c112 = arith.constant 112 : index
    %c0_5 = arith.constant 0 : index
    %15 = vector.load %arg2[%c112, %c0_5] : memref<120x128xf32, #tpu.memory_space<vmem>>, vector<1x8xf32>
    %cst = arith.constant dense<0.000000e+00> : vector<128x8xf32>
    %16 = tpu.matmul %13, %14, %cst {dimension_numbers = #tpu.dot_dimension_numbers<[1], [0], [0], [1], [0, 0, 1, 1], [], []>} : vector<128x15xf32>, vector<15x8xf32>, vector<128x8xf32> -> vector<128x8xf32>
    %17 = vector.broadcast %15 : vector<1x8xf32> to vector<128x8xf32>
    %18 = arith.addf %16, %17 : vector<128x8xf32>
    %cst_6 = arith.constant 0.000000e+00 : f32
    %19 = vector.broadcast %cst_6 : f32 to vector<128x8xf32>
    %20 = arith.maximumf %18, %19 : vector<128x8xf32>
    %21 = vector.shape_cast %20 : vector<128x8xf32> to vector<8x2x8x8xf32>
    %22 = vector.extract_strided_slice %21 {offsets = [0, 0, 0, 0], sizes = [8, 1, 8, 8], strides = [1, 1, 1, 1]} : vector<8x2x8x8xf32> to vector<8x1x8x8xf32>
    %23 = vector.shape_cast %22 : vector<8x1x8x8xf32> to vector<8x8x8xf32>
    %24 = vector.extract_strided_slice %21 {offsets = [0, 1, 0, 0], sizes = [8, 1, 8, 8], strides = [1, 1, 1, 1]} : vector<8x2x8x8xf32> to vector<8x1x8x8xf32>
    %25 = vector.shape_cast %24 : vector<8x1x8x8xf32> to vector<8x8x8xf32>
    %26 = arith.maximumf %23, %25 : vector<8x8x8xf32>
    %27 = vector.shape_cast %26 : vector<8x8x8xf32> to vector<8x64xf32>
    %c16 = arith.constant 16 : index
    %c0_7 = arith.constant 0 : index
    %28 = vector.load %arg2[%c16, %c0_7] : memref<120x128xf32, #tpu.memory_space<vmem>>, vector<64x32xf32>
    %c113 = arith.constant 113 : index
    %c0_8 = arith.constant 0 : index
    %29 = vector.load %arg2[%c113, %c0_8] : memref<120x128xf32, #tpu.memory_space<vmem>>, vector<1x32xf32>
    %c80 = arith.constant 80 : index
    %c0_9 = arith.constant 0 : index
    %30 = vector.load %arg2[%c80, %c0_9] : memref<120x128xf32, #tpu.memory_space<vmem>>, vector<32x16xf32>
    %c114 = arith.constant 114 : index
    %c0_10 = arith.constant 0 : index
    %31 = vector.load %arg2[%c114, %c0_10] : memref<120x128xf32, #tpu.memory_space<vmem>>, vector<1x16xf32>
    %c115 = arith.constant 115 : index
    %c0_11 = arith.constant 0 : index
    %32 = vector.load %arg2[%c115, %c0_11] : memref<120x128xf32, #tpu.memory_space<vmem>>, vector<1x16xf32>
    %c116 = arith.constant 116 : index
    %c0_12 = arith.constant 0 : index
    %33 = vector.load %arg2[%c116, %c0_12] : memref<120x128xf32, #tpu.memory_space<vmem>>, vector<1x1xf32>
    %cst_13 = arith.constant dense<0.000000e+00> : vector<8x32xf32>
    %34 = tpu.matmul %27, %28, %cst_13 {dimension_numbers = #tpu.dot_dimension_numbers<[1], [0], [0], [1], [0, 0, 1, 1], [], []>} : vector<8x64xf32>, vector<64x32xf32>, vector<8x32xf32> -> vector<8x32xf32>
    %35 = vector.broadcast %29 : vector<1x32xf32> to vector<8x32xf32>
    %36 = arith.addf %34, %35 : vector<8x32xf32>
    %cst_14 = arith.constant 0.000000e+00 : f32
    %37 = vector.broadcast %cst_14 : f32 to vector<8x32xf32>
    %38 = arith.maximumf %36, %37 : vector<8x32xf32>
    %cst_15 = arith.constant dense<0.000000e+00> : vector<8x16xf32>
    %39 = tpu.matmul %38, %30, %cst_15 {dimension_numbers = #tpu.dot_dimension_numbers<[1], [0], [0], [1], [0, 0, 1, 1], [], []>} : vector<8x32xf32>, vector<32x16xf32>, vector<8x16xf32> -> vector<8x16xf32>
    %40 = vector.broadcast %31 : vector<1x16xf32> to vector<8x16xf32>
    %41 = arith.addf %39, %40 : vector<8x16xf32>
    %cst_16 = arith.constant 0.000000e+00 : f32
    %42 = vector.broadcast %cst_16 : f32 to vector<8x16xf32>
    %43 = arith.maximumf %41, %42 : vector<8x16xf32>
    %44 = vector.broadcast %32 : vector<1x16xf32> to vector<8x16xf32>
    %45 = arith.mulf %43, %44 : vector<8x16xf32>
    %cst_17 = arith.constant dense<0.000000e+00> : vector<8xf32>
    %46 = vector.multi_reduction <add>, %45, %cst_17 [1] : vector<8x16xf32> to vector<8xf32>
    %47 = vector.shape_cast %46 : vector<8xf32> to vector<8x1xf32>
    %48 = vector.broadcast %33 : vector<1x1xf32> to vector<8x1xf32>
    %49 = arith.addf %47, %48 : vector<8x1xf32>
    %50 = arith.negf %49 : vector<8x1xf32>
    %51 = math.exp %50 : vector<8x1xf32>
    %cst_18 = arith.constant 1.000000e+00 : f32
    %52 = vector.broadcast %cst_18 : f32 to vector<8x1xf32>
    %53 = arith.addf %52, %51 : vector<8x1xf32>
    %54 = arith.divf %52, %53 : vector<8x1xf32>
    %55 = vector.shape_cast %54 : vector<8x1xf32> to vector<8x1xf32>
    %56 = vector.broadcast %55 : vector<8x1xf32> to vector<8x128xf32>
    %c0_19 = arith.constant 0 : index
    %c0_20 = arith.constant 0 : index
    %57 = vector.load %arg3[%c0_19, %c0_20] : memref<8x128xf32, #tpu.memory_space<vmem>>, vector<8x128xf32>
    tpu.vector_store %arg3[%c0_19, %c0_20], %56 {strides = array<i32>} : memref<8x128xf32, #tpu.memory_space<vmem>>, vector<8x128xf32>,
    return
  }
  func.func @transform_0(%arg0: i32) -> (i32, i32) {
    %c0_i32 = arith.constant 0 : i32
    %c0_i32_0 = arith.constant 0 : i32
    return %arg0, %c0_i32 : i32, i32
  }
  func.func @transform_1(%arg0: i32) -> (i32, i32) {
    %c0_i32 = arith.constant 0 : i32
    %c0_i32_0 = arith.constant 0 : i32
    %c0_i32_1 = arith.constant 0 : i32
    return %c0_i32, %c0_i32_0 : i32, i32
  }
  func.func @transform_2(%arg0: i32) -> (i32, i32) {
    %c0_i32 = arith.constant 0 : i32
    %c0_i32_0 = arith.constant 0 : i32
    return %arg0, %c0_i32 : i32, i32
  }
}

</mosaic_0001>

<llo_original>
// kernel: tpu_custom_call.1
$region0: #{tpu_custom_call.1}
  #allocation0 [shape = 'u32[]', space=smem, size = 0x4, offset = 0x4, fixed_abs, tag = 'smem constant byte address 0x4 - core index']
  #allocation1 [shape = 'u32[144,128]{1,0:T(1,128)}', space=vmem, size = 0x12000, scoped, tag = 'internal scratch']
  %s0 = inlined_call_operand.vmem [shape: s32[256,3], index: 0, kind: input, shape index: {}]
  %s1 = inlined_call_operand.vmem [shape: f32[120,128], index: 1, kind: input, shape index: {}]
  %s2 = inlined_call_operand.hbm [shape: f32[16,128], index: 2, kind: output, shape index: {}]
  %s3 = sld [smem:[#allocation0]]
  $region41: #{tpu_custom_call.1} parent=0
    _
  %s5 = ssub.s32 1, %s3
  %s6 = scalar_select 0, %s5, %s3
  $region1: #{tpu_custom_call.1} parent=0
    #allocation2 [shape = 'u8[8192]{0}', space=vmem, size = 0x2000, scoped, tag = 'output window, operand 0']
    #allocation3 [shape = 's32[2]{0}', space=sflag, size = 0x8, scoped, tag = 'scoped memory for tpu_custom_call.1']
    %7 = vsyncpa [#allocation3], 0
    %s8 = scalar_lea.sflag [#allocation3], 1
    %9 = vsyncpa %s8, 0
    loop: start=0, step=1, limit=4
    $region2: #{tpu_custom_call.1} parent=1 // loop_pre_header
      _
    $region3: #{tpu_custom_call.1} parent=1 // loop_header
      %s11 = sphi 0, %s15
      %p12 = scmp.ge.s32.totalorder %s11, 4
      %s21 = sphi 0, %s23
      %s24 = sphi 0, %s21
      %s25 = sphi 0, %s24
      %s41 = sphi 0, %s25
      %s45 = sphi 0, %s45
      %s47 = sphi 0, %s45
      %s48 = sphi 0, %s47
      %s62 = sphi 0, %s48
      %s68 = sphi 0, %s70
      %s71 = sphi 0, %s68
      %s72 = sphi 0, %s71
      %s88 = sphi 0, %s72
    $region4: #{tpu_custom_call.1} parent=1 // loop_header_branch
      %14 = sbr.rel (%p12) target = $region8
    $region5: #{tpu_custom_call.1} parent=1 // loop_body
      %s16 = ssub.s32 %s11, 1
      %s17 = ssub.s32 %s11, 2
      %s18 = sadd.s32 %s11, 1
      %s19 = ssub.s32 %s11, %s18
      %p20 = scmp.eq.s32.totalorder %s19, 0
      %s22 = sadd.s32 %s21, 1
      %s23 = scalar_select %p20, %s21, %s22
      %p26 = pneg %p20
      %p27 = scmp.eq.s32.totalorder %s11, 1
      %p28 = por %p26, %p27
      %p29 = scmp.ne.s32.totalorder %s21, %s24
      %p30 = scmp.eq.s32.totalorder %s11, 0
      %p31 = por %p29, %p30
      %p32 = scmp.ne.s32.totalorder %s21, %s24
      %p33 = scmp.eq.s32.totalorder %s16, 1
      %p34 = por %p32, %p33
      %p35 = scmp.ne.s32.totalorder %s24, %s25
      %p36 = scmp.eq.s32.totalorder %s16, 0
      %p37 = por %p35, %p36
      %p38 = scmp.ne.s32.totalorder %s24, %s25
      %p39 = scmp.eq.s32.totalorder %s17, 1
      %p40 = por %p38, %p39
      %p42 = scmp.ne.s32.totalorder %s25, %s41
      %p43 = scmp.eq.s32.totalorder %s17, 0
      %p44 = por %p42, %p43
      %s46 = sadd.s32 %s45, 1
      %p49 = scmp.eq.s32.totalorder %s11, 1
      %p50 = scmp.ne.s32.totalorder %s45, %s47
      %p51 = scmp.eq.s32.totalorder %s11, 0
      %p52 = por %p50, %p51
      %p53 = scmp.ne.s32.totalorder %s45, %s47
      %p54 = scmp.eq.s32.totalorder %s16, 1
      %p55 = por %p53, %p54
      %p56 = scmp.ne.s32.totalorder %s47, %s48
      %p57 = scmp.eq.s32.totalorder %s16, 0
      %p58 = por %p56, %p57
      %p59 = scmp.ne.s32.totalorder %s47, %s48
      %p60 = scmp.eq.s32.totalorder %s17, 1
      %p61 = por %p59, %p60
      %p63 = scmp.ne.s32.totalorder %s48, %s62
      %p64 = scmp.eq.s32.totalorder %s17, 0
      %p65 = por %p63, %p64
      %s66 = ssub.s32 %s11, %s18
      %p67 = scmp.eq.s32.totalorder %s66, 0
      %s69 = sadd.s32 %s68, 1
      %s70 = scalar_select %p67, %s68, %s69
      %p73 = pneg %p67
      %p74 = scmp.eq.s32.totalorder %s11, 1
      %p75 = por %p73, %p74
      %p76 = scmp.ne.s32.totalorder %s68, %s71
      %p77 = scmp.eq.s32.totalorder %s11, 0
      %p78 = por %p76, %p77
      %p79 = scmp.ne.s32.totalorder %s68, %s71
      %p80 = scmp.eq.s32.totalorder %s16, 1
      %p81 = por %p79, %p80
      %p82 = scmp.ne.s32.totalorder %s71, %s72
      %p83 = scmp.eq.s32.totalorder %s16, 0
      %p84 = por %p82, %p83
      %p85 = scmp.ne.s32.totalorder %s71, %s72
      %p86 = scmp.eq.s32.totalorder %s17, 1
      %p87 = por %p85, %p86
      %p89 = scmp.ne.s32.totalorder %s72, %s88
      %p90 = scmp.eq.s32.totalorder %s17, 0
      %p91 = por %p89, %p90
      %p92 = scmp.le.s32.totalorder 1, %s11
      %p93 = scmp.lt.s32.totalorder %s11, 3
      %p94 = pnand %p92, %p93
      %p95 = pneg %p94
      // Predicated region
      $region9: #{tpu_custom_call.1} parent=5 // pred_check
        _
      $region10: #{tpu_custom_call.1} parent=5 // pred_check_branch
        %97 = sbr.rel (%p94) target = $region12
      $region11: #{tpu_custom_call.1} parent=5 // pred_region
        %s98 = ssub.s32 %s11, 1
        // Predicated region
        $region13: #{tpu_custom_call.1} parent=11 // pred_check
          %p99 = pneg %p58
        $region14: #{tpu_custom_call.1} parent=11 // pred_check_branch
          %101 = sbr.rel (%p99) target = $region16
        $region15: #{tpu_custom_call.1} parent=11 // pred_region
          _
        $region16: #{tpu_custom_call.1} parent=11 // pred_fallthru
          _
      $region12: #{tpu_custom_call.1} parent=5 // pred_fallthru
        _
      %p102 = scmp.lt.s32.totalorder %s11, 2
      // Predicated region
      $region17: #{tpu_custom_call.1} parent=5 // pred_check
        %p103 = pneg %p102
      $region18: #{tpu_custom_call.1} parent=5 // pred_check_branch
        %105 = sbr.rel (%p103) target = $region20
      $region19: #{tpu_custom_call.1} parent=5 // pred_region
        // Predicated region
        $region21: #{tpu_custom_call.1} parent=19 // pred_check
          %p106 = pneg %p31
        $region22: #{tpu_custom_call.1} parent=19 // pred_check_branch
          %108 = sbr.rel (%p106) target = $region24
        $region23: #{tpu_custom_call.1} parent=19 // pred_region
          %s109 = smul.u32 16, %s11
          %p110 = scmp.lt.s32.totalorder %s109, 31
          %s111 = scalar_select %p110, %s109, 31
          %s112 = smul.addr %s111, 8
          %s113 = scalar_lea.vmem %s0, %s112
          %s114 = smul.u32 16, %s11
        $region24: #{tpu_custom_call.1} parent=19 // pred_fallthru
          _
      $region20: #{tpu_custom_call.1} parent=5 // pred_fallthru
        _
      %p115 = scmp.le.s32.totalorder 1, %s11
      %p116 = scmp.lt.s32.totalorder %s11, 3
      %p117 = pnand %p115, %p116
      %p118 = pneg %p117
      // Predicated region
      $region25: #{tpu_custom_call.1} parent=5 // pred_check
        _
      $region26: #{tpu_custom_call.1} parent=5 // pred_check_branch
        %120 = sbr.rel (%p117) target = $region28
      $region27: #{tpu_custom_call.1} parent=5 // pred_region
        %s121 = ssub.s32 %s11, 1
        %s122 = smul.u32 16, %s16
        %p123 = scmp.lt.s32.totalorder %s122, 31
        %s124 = scalar_select %p123, %s122, 31
        %s125 = smul.addr %s124, 8
        %s126 = scalar_lea.vmem %s0, %s125
        %p127 = pneg %p37
        %p128 = pneg %p34
        %p129 = pneg %p58
        %p130 = pneg %p55
        %p131 = pneg %p84
        %p132 = pneg %p81
        %s133 = sand.u32 %s71, 1
        %s134 = scalar_lea.sflag [#allocation3], %s133
        %s135 = sand.u32 %s71, 1
        %s136 = smul.addr %s135, 8
        %s137 = scalar_lea.vmem [#allocation2], %s136
        %s138 = smul.u32 16, %s16
        %p139 = scmp.lt.s32.totalorder %s138, 31
        %s140 = scalar_select %p139, %s138, 31
        %s141 = smul.addr %s140, 8
        %s142 = scalar_lea.vmem %s0, %s141
        %s143 = smul.u32 16, %s16
        %v144 = vlaneseq
        %v145 = vand.u32 %v144, 127
        %v146 = vld [vmem:[%s142] sm:$0xff]
        %v147 = vld [vmem:[%s142 + $0x8] sm:$0xff]
        %v148 = vld [vmem:[%s142 + $0x10] sm:$0xff]
        %v149 = vld [vmem:[%s142 + $0x18] sm:$0xff]
        %v150 = vld [vmem:[%s142 + $0x20] sm:$0xff]
        %v151 = vld [vmem:[%s142 + $0x28] sm:$0xff]
        %v152 = vld [vmem:[%s142 + $0x30] sm:$0xff]
        %v153 = vld [vmem:[%s142 + $0x38] sm:$0xff]
        %v154 = vld [vmem:[%s142 + $0x40] sm:$0xff]
        %v155 = vld [vmem:[%s142 + $0x48] sm:$0xff]
        %v156 = vld [vmem:[%s142 + $0x50] sm:$0xff]
        %v157 = vld [vmem:[%s142 + $0x58] sm:$0xff]
        %v158 = vld [vmem:[%s142 + $0x60] sm:$0xff]
        %v159 = vld [vmem:[%s142 + $0x68] sm:$0xff]
        %v160 = vld [vmem:[%s142 + $0x70] sm:$0xff]
        %v161 = vld [vmem:[%s142 + $0x78] sm:$0xff]
        %162 = vset.pattern.permute.xlu0 0
        %163 = vperm.xlu0 %162, %v146
        %v164 = vpop.permute.xlu0 %163
        %165 = vset.pattern.permute.xlu0 0
        %166 = vperm.xlu0 %165, %v147
        %v167 = vpop.permute.xlu0 %166
        %168 = vset.pattern.permute.xlu0 0
        %169 = vperm.xlu0 %168, %v148
        %v170 = vpop.permute.xlu0 %169
        %171 = vset.pattern.permute.xlu0 0
        %172 = vperm.xlu0 %171, %v149
        %v173 = vpop.permute.xlu0 %172
        %174 = vset.pattern.permute.xlu0 0
        %175 = vperm.xlu0 %174, %v150
        %v176 = vpop.permute.xlu0 %175
        %177 = vset.pattern.permute.xlu0 0
        %178 = vperm.xlu0 %177, %v151
        %v179 = vpop.permute.xlu0 %178
        %180 = vset.pattern.permute.xlu0 0
        %181 = vperm.xlu0 %180, %v152
        %v182 = vpop.permute.xlu0 %181
        %183 = vset.pattern.permute.xlu0 0
        %184 = vperm.xlu0 %183, %v153
        %v185 = vpop.permute.xlu0 %184
        %186 = vset.pattern.permute.xlu0 0
        %187 = vperm.xlu0 %186, %v154
        %v188 = vpop.permute.xlu0 %187
        %189 = vset.pattern.permute.xlu0 0
        %190 = vperm.xlu0 %189, %v155
        %v191 = vpop.permute.xlu0 %190
        %192 = vset.pattern.permute.xlu0 0
        %193 = vperm.xlu0 %192, %v156
        %v194 = vpop.permute.xlu0 %193
        %195 = vset.pattern.permute.xlu0 0
        %196 = vperm.xlu0 %195, %v157
        %v197 = vpop.permute.xlu0 %196
        %198 = vset.pattern.permute.xlu0 0
        %199 = vperm.xlu0 %198, %v158
        %v200 = vpop.permute.xlu0 %199
        %201 = vset.pattern.permute.xlu0 0
        %202 = vperm.xlu0 %201, %v159
        %v203 = vpop.permute.xlu0 %202
        %204 = vset.pattern.permute.xlu0 0
        %205 = vperm.xlu0 %204, %v160
        %v206 = vpop.permute.xlu0 %205
        %207 = vset.pattern.permute.xlu0 0
        %208 = vperm.xlu0 %207, %v161
        %v209 = vpop.permute.xlu0 %208
        %vm210 = vcmp.eq.s32.totalorder %v164, %v145
        %vm211 = vcmp.eq.s32.totalorder %v167, %v145
        %vm212 = vcmp.eq.s32.totalorder %v170, %v145
        %vm213 = vcmp.eq.s32.totalorder %v173, %v145
        %vm214 = vcmp.eq.s32.totalorder %v176, %v145
        %vm215 = vcmp.eq.s32.totalorder %v179, %v145
        %vm216 = vcmp.eq.s32.totalorder %v182, %v145
        %vm217 = vcmp.eq.s32.totalorder %v185, %v145
        %vm218 = vcmp.eq.s32.totalorder %v188, %v145
        %vm219 = vcmp.eq.s32.totalorder %v191, %v145
        %vm220 = vcmp.eq.s32.totalorder %v194, %v145
        %vm221 = vcmp.eq.s32.totalorder %v197, %v145
        %vm222 = vcmp.eq.s32.totalorder %v200, %v145
        %vm223 = vcmp.eq.s32.totalorder %v203, %v145
        %vm224 = vcmp.eq.s32.totalorder %v206, %v145
        %vm225 = vcmp.eq.s32.totalorder %v209, %v145
        %226 = vset.pattern.permute.xlu0 1
        %227 = vperm.xlu0 %226, %v146
        %v228 = vpop.permute.xlu0 %227
        %229 = vset.pattern.permute.xlu0 1
        %230 = vperm.xlu0 %229, %v147
        %v231 = vpop.permute.xlu0 %230
        %232 = vset.pattern.permute.xlu0 1
        %233 = vperm.xlu0 %232, %v148
        %v234 = vpop.permute.xlu0 %233
        %235 = vset.pattern.permute.xlu0 1
        %236 = vperm.xlu0 %235, %v149
        %v237 = vpop.permute.xlu0 %236
        %238 = vset.pattern.permute.xlu0 1
        %239 = vperm.xlu0 %238, %v150
        %v240 = vpop.permute.xlu0 %239
        %241 = vset.pattern.permute.xlu0 1
        %242 = vperm.xlu0 %241, %v151
        %v243 = vpop.permute.xlu0 %242
        %244 = vset.pattern.permute.xlu0 1
        %245 = vperm.xlu0 %244, %v152
        %v246 = vpop.permute.xlu0 %245
        %247 = vset.pattern.permute.xlu0 1
        %248 = vperm.xlu0 %247, %v153
        %v249 = vpop.permute.xlu0 %248
        %250 = vset.pattern.permute.xlu0 1
        %251 = vperm.xlu0 %250, %v154
        %v252 = vpop.permute.xlu0 %251
        %253 = vset.pattern.permute.xlu0 1
        %254 = vperm.xlu0 %253, %v155
        %v255 = vpop.permute.xlu0 %254
        %256 = vset.pattern.permute.xlu0 1
        %257 = vperm.xlu0 %256, %v156
        %v258 = vpop.permute.xlu0 %257
        %259 = vset.pattern.permute.xlu0 1
        %260 = vperm.xlu0 %259, %v157
        %v261 = vpop.permute.xlu0 %260
        %262 = vset.pattern.permute.xlu0 1
        %263 = vperm.xlu0 %262, %v158
        %v264 = vpop.permute.xlu0 %263
        %265 = vset.pattern.permute.xlu0 1
        %266 = vperm.xlu0 %265, %v159
        %v267 = vpop.permute.xlu0 %266
        %268 = vset.pattern.permute.xlu0 1
        %269 = vperm.xlu0 %268, %v160
        %v270 = vpop.permute.xlu0 %269
        %271 = vset.pattern.permute.xlu0 1
        %272 = vperm.xlu0 %271, %v161
        %v273 = vpop.permute.xlu0 %272
        %vm274 = vcmp.eq.s32.totalorder %v228, %v145
        %vm275 = vcmp.eq.s32.totalorder %v231, %v145
        %vm276 = vcmp.eq.s32.totalorder %v234, %v145
        %vm277 = vcmp.eq.s32.totalorder %v237, %v145
        %vm278 = vcmp.eq.s32.totalorder %v240, %v145
        %vm279 = vcmp.eq.s32.totalorder %v243, %v145
        %vm280 = vcmp.eq.s32.totalorder %v246, %v145
        %vm281 = vcmp.eq.s32.totalorder %v249, %v145
        %vm282 = vcmp.eq.s32.totalorder %v252, %v145
        %vm283 = vcmp.eq.s32.totalorder %v255, %v145
        %vm284 = vcmp.eq.s32.totalorder %v258, %v145
        %vm285 = vcmp.eq.s32.totalorder %v261, %v145
        %vm286 = vcmp.eq.s32.totalorder %v264, %v145
        %vm287 = vcmp.eq.s32.totalorder %v267, %v145
        %vm288 = vcmp.eq.s32.totalorder %v270, %v145
        %vm289 = vcmp.eq.s32.totalorder %v273, %v145
        %vm290 = vmor %vm210, %vm274
        %vm291 = vmor %vm211, %vm275
        %vm292 = vmor %vm212, %vm276
        %vm293 = vmor %vm213, %vm277
        %vm294 = vmor %vm214, %vm278
        %vm295 = vmor %vm215, %vm279
        %vm296 = vmor %vm216, %vm280
        %vm297 = vmor %vm217, %vm281
        %vm298 = vmor %vm218, %vm282
        %vm299 = vmor %vm219, %vm283
        %vm300 = vmor %vm220, %vm284
        %vm301 = vmor %vm221, %vm285
        %vm302 = vmor %vm222, %vm286
        %vm303 = vmor %vm223, %vm287
        %vm304 = vmor %vm224, %vm288
        %vm305 = vmor %vm225, %vm289
        %306 = vset.pattern.permute.xlu0 2
        %307 = vperm.xlu0 %306, %v146
        %v308 = vpop.permute.xlu0 %307
        %309 = vset.pattern.permute.xlu0 2
        %310 = vperm.xlu0 %309, %v147
        %v311 = vpop.permute.xlu0 %310
        %312 = vset.pattern.permute.xlu0 2
        %313 = vperm.xlu0 %312, %v148
        %v314 = vpop.permute.xlu0 %313
        %315 = vset.pattern.permute.xlu0 2
        %316 = vperm.xlu0 %315, %v149
        %v317 = vpop.permute.xlu0 %316
        %318 = vset.pattern.permute.xlu0 2
        %319 = vperm.xlu0 %318, %v150
        %v320 = vpop.permute.xlu0 %319
        %321 = vset.pattern.permute.xlu0 2
        %322 = vperm.xlu0 %321, %v151
        %v323 = vpop.permute.xlu0 %322
        %324 = vset.pattern.permute.xlu0 2
        %325 = vperm.xlu0 %324, %v152
        %v326 = vpop.permute.xlu0 %325
        %327 = vset.pattern.permute.xlu0 2
        %328 = vperm.xlu0 %327, %v153
        %v329 = vpop.permute.xlu0 %328
        %330 = vset.pattern.permute.xlu0 2
        %331 = vperm.xlu0 %330, %v154
        %v332 = vpop.permute.xlu0 %331
        %333 = vset.pattern.permute.xlu0 2
        %334 = vperm.xlu0 %333, %v155
        %v335 = vpop.permute.xlu0 %334
        %336 = vset.pattern.permute.xlu0 2
        %337 = vperm.xlu0 %336, %v156
        %v338 = vpop.permute.xlu0 %337
        %339 = vset.pattern.permute.xlu0 2
        %340 = vperm.xlu0 %339, %v157
        %v341 = vpop.permute.xlu0 %340
        %342 = vset.pattern.permute.xlu0 2
        %343 = vperm.xlu0 %342, %v158
        %v344 = vpop.permute.xlu0 %343
        %345 = vset.pattern.permute.xlu0 2
        %346 = vperm.xlu0 %345, %v159
        %v347 = vpop.permute.xlu0 %346
        %348 = vset.pattern.permute.xlu0 2
        %349 = vperm.xlu0 %348, %v160
        %v350 = vpop.permute.xlu0 %349
        %351 = vset.pattern.permute.xlu0 2
        %352 = vperm.xlu0 %351, %v161
        %v353 = vpop.permute.xlu0 %352
        %vm354 = vcmp.eq.s32.totalorder %v308, %v145
        %vm355 = vcmp.eq.s32.totalorder %v311, %v145
        %vm356 = vcmp.eq.s32.totalorder %v314, %v145
        %vm357 = vcmp.eq.s32.totalorder %v317, %v145
        %vm358 = vcmp.eq.s32.totalorder %v320, %v145
        %vm359 = vcmp.eq.s32.totalorder %v323, %v145
        %vm360 = vcmp.eq.s32.totalorder %v326, %v145
        %vm361 = vcmp.eq.s32.totalorder %v329, %v145
        %vm362 = vcmp.eq.s32.totalorder %v332, %v145
        %vm363 = vcmp.eq.s32.totalorder %v335, %v145
        %vm364 = vcmp.eq.s32.totalorder %v338, %v145
        %vm365 = vcmp.eq.s32.totalorder %v341, %v145
        %vm366 = vcmp.eq.s32.totalorder %v344, %v145
        %vm367 = vcmp.eq.s32.totalorder %v347, %v145
        %vm368 = vcmp.eq.s32.totalorder %v350, %v145
        %vm369 = vcmp.eq.s32.totalorder %v353, %v145
        %vm370 = vmor %vm290, %vm354
        %vm371 = vmor %vm291, %vm355
        %vm372 = vmor %vm292, %vm356
        %vm373 = vmor %vm293, %vm357
        %vm374 = vmor %vm294, %vm358
        %vm375 = vmor %vm295, %vm359
        %vm376 = vmor %vm296, %vm360
        %vm377 = vmor %vm297, %vm361
        %vm378 = vmor %vm298, %vm362
        %vm379 = vmor %vm299, %vm363
        %vm380 = vmor %vm300, %vm364
        %vm381 = vmor %vm301, %vm365
        %vm382 = vmor %vm302, %vm366
        %vm383 = vmor %vm303, %vm367
        %vm384 = vmor %vm304, %vm368
        %vm385 = vmor %vm305, %vm369
        %v386 = vsel %vm370, 1, 0
        %v387 = vsel %vm371, 1, 0
        %v388 = vsel %vm372, 1, 0
        %v389 = vsel %vm373, 1, 0
        %v390 = vsel %vm374, 1, 0
        %v391 = vsel %vm375, 1, 0
        %v392 = vsel %vm376, 1, 0
        %v393 = vsel %vm377, 1, 0
        %v394 = vsel %vm378, 1, 0
        %v395 = vsel %vm379, 1, 0
        %v396 = vsel %vm380, 1, 0
        %v397 = vsel %vm381, 1, 0
        %v398 = vsel %vm382, 1, 0
        %v399 = vsel %vm383, 1, 0
        %v400 = vsel %vm384, 1, 0
        %v401 = vsel %vm385, 1, 0
        %v402 = vcvt.s32.f32 %v386
        %v403 = vcvt.s32.f32 %v387
        %v404 = vcvt.s32.f32 %v388
        %v405 = vcvt.s32.f32 %v389
        %v406 = vcvt.s32.f32 %v390
        %v407 = vcvt.s32.f32 %v391
        %v408 = vcvt.s32.f32 %v392
        %v409 = vcvt.s32.f32 %v393
        %v410 = vcvt.s32.f32 %v394
        %v411 = vcvt.s32.f32 %v395
        %v412 = vcvt.s32.f32 %v396
        %v413 = vcvt.s32.f32 %v397
        %v414 = vcvt.s32.f32 %v398
        %v415 = vcvt.s32.f32 %v399
        %v416 = vcvt.s32.f32 %v400
        %v417 = vcvt.s32.f32 %v401
        %v418 = vld [vmem:[%s1] sm:$0xff]
        %v419 = vld [vmem:[%s1 + $0x8] sm:$0x7f]
        %v420 = vld [vmem:[%s1 + $0x70] sm:$0x1]
        %v421 = vlaneseq
        %v422 = vshrl.u32 %v421, 7
        %v423 = vsub.s32 0, %v422
        %v424 = vrot.slane %v420, %v423
        %vm425 = vcmask 121856
        %v427 = vsel %vm425, %v402, 0
        %v430 = vsel %vm425, %v403, 0
        %v433 = vsel %vm425, %v404, 0
        %v436 = vsel %vm425, %v405, 0
        %v439 = vsel %vm425, %v406, 0
        %v442 = vsel %vm425, %v407, 0
        %v445 = vsel %vm425, %v408, 0
        %v448 = vsel %vm425, %v409, 0
        %v451 = vsel %vm425, %v410, 0
        %v454 = vsel %vm425, %v411, 0
        %v457 = vsel %vm425, %v412, 0
        %v460 = vsel %vm425, %v413, 0
        %v463 = vsel %vm425, %v414, 0
        %v466 = vsel %vm425, %v415, 0
        %v469 = vsel %vm425, %v416, 0
        %v472 = vsel %vm425, %v417, 0
        %vm474 = vcmask 1046528
        %v476 = vsel %vm474, %v419, 0
        %478 = vmatprep.subr.mxu0 0.0
        %479 = vmatpush1.msra.mxu0 0.0
        %480 = vmatprep.subr.mxu0 0.0
        %481 = vmatpush1.msra.mxu0 0.0
        %482 = vmatprep.subr.mxu0 0.0
        %483 = vmatpush1.msra.mxu0 0.0
        %484 = vmatprep.subr.mxu0 0.0
        %485 = vmatpush1.msra.mxu0 0.0
        %486 = vmatprep.subr.mxu0 0.0
        %487 = vmatpush1.msra.mxu0 0.0
        %488 = vmatprep.subr.mxu0 0.0
        %489 = vmatpush1.msra.mxu0 0.0
        %490 = vmatprep.subr.mxu0 0.0
        %491 = vmatpush1.msra.mxu0 0.0
        %492 = vmatprep.subr.mxu0 0.0
        %493 = vmatpush1.msra.mxu0 0.0
        %494 = vmatprep.subr.mxu0 0.0
        %495 = vmatpush1.msra.mxu0 0.0
        %496 = vmatprep.subr.mxu0 0.0
        %497 = vmatpush1.msra.mxu0 0.0
        %498 = vmatprep.subr.mxu0 0.0
        %499 = vmatpush1.msra.mxu0 0.0
        %500 = vmatprep.subr.mxu0 0.0
        %501 = vmatpush1.msra.mxu0 0.0
        %502 = vmatprep.subr.mxu0 0.0
        %503 = vmatpush1.msra.mxu0 0.0
        %504 = vmatprep.subr.mxu0 0.0
        %505 = vmatpush1.msra.mxu0 0.0
        %506 = vmatprep.subr.mxu0 0.0
        %507 = vmatpush1.msra.mxu0 %v476
        %508 = vmatprep.subr.mxu0 0.0
        %509 = vmatpush1.msra.mxu0 %v418
        %510 = vmatprep.subr.mxu0 0.0
        %511 = vmatpush2.msra.mxu0 0.0
        %512 = vmatprep.subr.mxu0 0.0
        %513 = vmatpush2.msra.mxu0 0.0
        %514 = vmatprep.subr.mxu0 0.0
        %515 = vmatpush2.msra.mxu0 0.0
        %516 = vmatprep.subr.mxu0 0.0
        %517 = vmatpush2.msra.mxu0 0.0
        %518 = vmatprep.subr.mxu0 0.0
        %519 = vmatpush2.msra.mxu0 0.0
        %520 = vmatprep.subr.mxu0 0.0
        %521 = vmatpush2.msra.mxu0 0.0
        %522 = vmatprep.subr.mxu0 0.0
        %523 = vmatpush2.msra.mxu0 0.0
        %524 = vmatprep.subr.mxu0 0.0
        %525 = vmatpush2.msra.mxu0 0.0
        %526 = vmatprep.subr.mxu0 0.0
        %527 = vmatpush2.msra.mxu0 0.0
        %528 = vmatprep.subr.mxu0 0.0
        %529 = vmatpush2.msra.mxu0 0.0
        %530 = vmatprep.subr.mxu0 0.0
        %531 = vmatpush2.msra.mxu0 0.0
        %532 = vmatprep.subr.mxu0 0.0
        %533 = vmatpush2.msra.mxu0 0.0
        %534 = vmatprep.subr.mxu0 0.0
        %535 = vmatpush2.msra.mxu0 0.0
        %536 = vmatprep.subr.mxu0 0.0
        %537 = vmatpush2.msra.mxu0 0.0
        %538 = vmatprep.subr.mxu0 0.0
        %539 = vmatpush2.msra.mxu0 0.0
        %540 = vmatprep.subr.mxu0 0.0
        %541 = vmatpush2.msra.mxu0 0.0
        %542 = vmatprep.mubr.f32.mxu0 0.0
        %543 = vmatmul.mubr.f32.gmra.mxu0 %v427
        %v544 = vpop.f32.mrf.mxu0
        %v545 = vadd.f32 %v424, %v544
        %v546 = vpop.f32.mrf.mxu0
        %547 = vmatprep.mubr.f32.mxu0 0.0
        %548 = vmatmul.mubr.f32.gmra.mxu0 %v430
        %v549 = vpop.f32.mrf.mxu0
        %v550 = vadd.f32 %v424, %v549
        %v551 = vpop.f32.mrf.mxu0
        %552 = vmatprep.mubr.f32.mxu0 0.0
        %553 = vmatmul.mubr.f32.gmra.mxu0 %v433
        %v554 = vpop.f32.mrf.mxu0
        %v555 = vadd.f32 %v424, %v554
        %v556 = vpop.f32.mrf.mxu0
        %557 = vmatprep.mubr.f32.mxu0 0.0
        %558 = vmatmul.mubr.f32.gmra.mxu0 %v436
        %v559 = vpop.f32.mrf.mxu0
        %v560 = vadd.f32 %v424, %v559
        %v561 = vpop.f32.mrf.mxu0
        %562 = vmatprep.mubr.f32.mxu0 0.0
        %563 = vmatmul.mubr.f32.gmra.mxu0 %v439
        %v564 = vpop.f32.mrf.mxu0
        %v565 = vadd.f32 %v424, %v564
        %v566 = vpop.f32.mrf.mxu0
        %567 = vmatprep.mubr.f32.mxu0 0.0
        %568 = vmatmul.mubr.f32.gmra.mxu0 %v442
        %v569 = vpop.f32.mrf.mxu0
        %v570 = vadd.f32 %v424, %v569
        %v571 = vpop.f32.mrf.mxu0
        %572 = vmatprep.mubr.f32.mxu0 0.0
        %573 = vmatmul.mubr.f32.gmra.mxu0 %v445
        %v574 = vpop.f32.mrf.mxu0
        %v575 = vadd.f32 %v424, %v574
        %v576 = vpop.f32.mrf.mxu0
        %577 = vmatprep.mubr.f32.mxu0 0.0
        %578 = vmatmul.mubr.f32.gmra.mxu0 %v448
        %v579 = vpop.f32.mrf.mxu0
        %v580 = vadd.f32 %v424, %v579
        %v581 = vpop.f32.mrf.mxu0
        %582 = vmatprep.mubr.f32.mxu0 0.0
        %583 = vmatmul.mubr.f32.gmra.mxu0 %v451
        %v584 = vpop.f32.mrf.mxu0
        %v585 = vadd.f32 %v424, %v584
        %v586 = vpop.f32.mrf.mxu0
        %587 = vmatprep.mubr.f32.mxu0 0.0
        %588 = vmatmul.mubr.f32.gmra.mxu0 %v454
        %v589 = vpop.f32.mrf.mxu0
        %v590 = vadd.f32 %v424, %v589
        %v591 = vpop.f32.mrf.mxu0
        %592 = vmatprep.mubr.f32.mxu0 0.0
        %593 = vmatmul.mubr.f32.gmra.mxu0 %v457
        %v594 = vpop.f32.mrf.mxu0
        %v595 = vadd.f32 %v424, %v594
        %v596 = vpop.f32.mrf.mxu0
        %597 = vmatprep.mubr.f32.mxu0 0.0
        %598 = vmatmul.mubr.f32.gmra.mxu0 %v460
        %v599 = vpop.f32.mrf.mxu0
        %v600 = vadd.f32 %v424, %v599
        %v601 = vpop.f32.mrf.mxu0
        %602 = vmatprep.mubr.f32.mxu0 0.0
        %603 = vmatmul.mubr.f32.gmra.mxu0 %v463
        %v604 = vpop.f32.mrf.mxu0
        %v605 = vadd.f32 %v424, %v604
        %v606 = vpop.f32.mrf.mxu0
        %607 = vmatprep.mubr.f32.mxu0 0.0
        %608 = vmatmul.mubr.f32.gmra.mxu0 %v466
        %v609 = vpop.f32.mrf.mxu0
        %v610 = vadd.f32 %v424, %v609
        %v611 = vpop.f32.mrf.mxu0
        %612 = vmatprep.mubr.f32.mxu0 0.0
        %613 = vmatmul.mubr.f32.gmra.mxu0 %v469
        %v614 = vpop.f32.mrf.mxu0
        %v615 = vadd.f32 %v424, %v614
        %v616 = vpop.f32.mrf.mxu0
        %617 = vmatprep.mubr.f32.mxu0 0.0
        %618 = vmatmul.mubr.f32.gmra.mxu0 %v472
        %v619 = vpop.f32.mrf.mxu0
        %v620 = vadd.f32 %v424, %v619
        %v621 = vpop.f32.mrf.mxu0
        %622 = vdwg.mxu0
        %v623 = vmax.f32 %v545, 0.0
        %v624 = vmax.f32 %v550, 0.0
        %v625 = vmax.f32 %v555, 0.0
        %v626 = vmax.f32 %v560, 0.0
        %v627 = vmax.f32 %v565, 0.0
        %v628 = vmax.f32 %v570, 0.0
        %v629 = vmax.f32 %v575, 0.0
        %v630 = vmax.f32 %v580, 0.0
        %v631 = vmax.f32 %v585, 0.0
        %v632 = vmax.f32 %v590, 0.0
        %v633 = vmax.f32 %v595, 0.0
        %v634 = vmax.f32 %v600, 0.0
        %v635 = vmax.f32 %v605, 0.0
        %v636 = vmax.f32 %v610, 0.0
        %v637 = vmax.f32 %v615, 0.0
        %v638 = vmax.f32 %v620, 0.0
        %v639 = vmax.f32 %v623, %v624
        %v640 = vmax.f32 %v625, %v626
        %v641 = vmax.f32 %v627, %v628
        %v642 = vmax.f32 %v629, %v630
        %v643 = vmax.f32 %v631, %v632
        %v644 = vmax.f32 %v633, %v634
        %v645 = vmax.f32 %v635, %v636
        %v646 = vmax.f32 %v637, %v638
        %v647 = vcombine.low %v639, %v641
        %v648 = vcombine.high %v639, %v641
        %v650 = vunpack.c.l.s4 1983009808
        %v651 = vunpack.c.0.s8 %v650
        %v652 = vlaneseq
        %v653 = vshrl.u32 %v652, 7
        %v654 = vsub.s32 %v651, %v653
        %v655 = vrot.slane %v647, %v654
        %v657 = vunpack.c.l.s4 1983009808
        %v658 = vunpack.c.0.s8 %v657
        %v659 = vlaneseq
        %v660 = vshrl.u32 %v659, 7
        %v661 = vsub.s32 %v658, %v660
        %v662 = vrot.slane %v648, %v661
        %v663 = vcombine.low %v640, %v642
        %v664 = vcombine.high %v640, %v642
        %v666 = vunpack.c.l.s4 1983009808
        %v667 = vunpack.c.0.s8 %v666
        %v668 = vlaneseq
        %v669 = vshrl.u32 %v668, 7
        %v670 = vsub.s32 %v667, %v669
        %v671 = vrot.slane %v663, %v670
        %v673 = vunpack.c.l.s4 1983009808
        %v674 = vunpack.c.0.s8 %v673
        %v675 = vlaneseq
        %v676 = vshrl.u32 %v675, 7
        %v677 = vsub.s32 %v674, %v676
        %v678 = vrot.slane %v664, %v677
        %v679 = vcombine.low %v643, %v645
        %v680 = vcombine.high %v643, %v645
        %v682 = vunpack.c.l.s4 1983009808
        %v683 = vunpack.c.0.s8 %v682
        %v684 = vlaneseq
        %v685 = vshrl.u32 %v684, 7
        %v686 = vsub.s32 %v683, %v685
        %v687 = vrot.slane %v679, %v686
        %v689 = vunpack.c.l.s4 1983009808
        %v690 = vunpack.c.0.s8 %v689
        %v691 = vlaneseq
        %v692 = vshrl.u32 %v691, 7
        %v693 = vsub.s32 %v690, %v692
        %v694 = vrot.slane %v680, %v693
        %v695 = vcombine.low %v644, %v646
        %v696 = vcombine.high %v644, %v646
        %v698 = vunpack.c.l.s4 1983009808
        %v699 = vunpack.c.0.s8 %v698
        %v700 = vlaneseq
        %v701 = vshrl.u32 %v700, 7
        %v702 = vsub.s32 %v699, %v701
        %v703 = vrot.slane %v695, %v702
        %v705 = vunpack.c.l.s4 1983009808
        %v706 = vunpack.c.0.s8 %v705
        %v707 = vlaneseq
        %v708 = vshrl.u32 %v707, 7
        %v709 = vsub.s32 %v706, %v708
        %v710 = vrot.slane %v696, %v709
        %v711 = vcombine.low %v655, %v671
        %v712 = vcombine.high %v655, %v671
        %v714 = vunpack.c.l.s4 1934713408
        %v715 = vunpack.c.0.s8 %v714
        %v716 = vlaneseq
        %v717 = vshrl.u32 %v716, 7
        %v718 = vsub.s32 %v715, %v717
        %v719 = vrot.slane %v711, %v718
        %v721 = vunpack.c.l.s4 1934713408
        %v722 = vunpack.c.0.s8 %v721
        %v723 = vlaneseq
        %v724 = vshrl.u32 %v723, 7
        %v725 = vsub.s32 %v722, %v724
        %v726 = vrot.slane %v712, %v725
        %v727 = vcombine.low %v662, %v678
        %v728 = vcombine.high %v662, %v678
        %v730 = vunpack.c.l.s4 1934713408
        %v731 = vunpack.c.0.s8 %v730
        %v732 = vlaneseq
        %v733 = vshrl.u32 %v732, 7
        %v734 = vsub.s32 %v731, %v733
        %v735 = vrot.slane %v727, %v734
        %v737 = vunpack.c.l.s4 1934713408
        %v738 = vunpack.c.0.s8 %v737
        %v739 = vlaneseq
        %v740 = vshrl.u32 %v739, 7
        %v741 = vsub.s32 %v738, %v740
        %v742 = vrot.slane %v728, %v741
        %v743 = vcombine.low %v687, %v703
        %v744 = vcombine.high %v687, %v703
        %v746 = vunpack.c.l.s4 1934713408
        %v747 = vunpack.c.0.s8 %v746
        %v748 = vlaneseq
        %v749 = vshrl.u32 %v748, 7
        %v750 = vsub.s32 %v747, %v749
        %v751 = vrot.slane %v743, %v750
        %v753 = vunpack.c.l.s4 1934713408
        %v754 = vunpack.c.0.s8 %v753
        %v755 = vlaneseq
        %v756 = vshrl.u32 %v755, 7
        %v757 = vsub.s32 %v754, %v756
        %v758 = vrot.slane %v744, %v757
        %v759 = vcombine.low %v694, %v710
        %v760 = vcombine.high %v694, %v710
        %v762 = vunpack.c.l.s4 1934713408
        %v763 = vunpack.c.0.s8 %v762
        %v764 = vlaneseq
        %v765 = vshrl.u32 %v764, 7
        %v766 = vsub.s32 %v763, %v765
        %v767 = vrot.slane %v759, %v766
        %v769 = vunpack.c.l.s4 1934713408
        %v770 = vunpack.c.0.s8 %v769
        %v771 = vlaneseq
        %v772 = vshrl.u32 %v771, 7
        %v773 = vsub.s32 %v770, %v772
        %v774 = vrot.slane %v760, %v773
        %v775 = vcombine.low %v719, %v751
        %v776 = vcombine.high %v719, %v751
        %v777 = vcombine.low %v726, %v758
        %v778 = vcombine.high %v726, %v758
        %v779 = vcombine.low %v735, %v767
        %v780 = vcombine.high %v735, %v767
        %v781 = vcombine.low %v742, %v774
        %v782 = vcombine.high %v742, %v774
        %784 = vrot.lane.b32.xlu0 %v776, 8
        %v785 = vpop.permute.xlu0 %784
        %788 = vrot.lane.b32.xlu0 %v777, 16
        %v789 = vpop.permute.xlu0 %788
        %792 = vrot.lane.b32.xlu0 %v778, 24
        %v793 = vpop.permute.xlu0 %792
        %796 = vrot.lane.b32.xlu0 %v779, 32
        %v797 = vpop.permute.xlu0 %796
        %800 = vrot.lane.b32.xlu0 %v780, 40
        %v801 = vpop.permute.xlu0 %800
        %804 = vrot.lane.b32.xlu0 %v781, 48
        %v805 = vpop.permute.xlu0 %804
        %808 = vrot.lane.b32.xlu0 %v782, 56
        %v809 = vpop.permute.xlu0 %808
        %vm811 = vcmask 64512
        %v812 = vsel %vm811, %v775, %v785
        %vm813 = vcmask 130048
        %v814 = vsel %vm813, %v812, %v789
        %vm815 = vcmask 195584
        %v816 = vsel %vm815, %v814, %v793
        %vm817 = vcmask 261120
        %v818 = vsel %vm817, %v816, %v797
        %vm819 = vcmask 326656
        %v820 = vsel %vm819, %v818, %v801
        %vm821 = vcmask 392192
        %v822 = vsel %vm821, %v820, %v805
        %vm823 = vcmask 457728
        %v824 = vsel %vm823, %v822, %v809
        %v825 = vld [vmem:[%s1 + $0x10] sm:$0xff]
        %v826 = vld [vmem:[%s1 + $0x18] sm:$0xff]
        %v827 = vld [vmem:[%s1 + $0x20] sm:$0xff]
        %v828 = vld [vmem:[%s1 + $0x28] sm:$0xff]
        %v829 = vld [vmem:[%s1 + $0x30] sm:$0xff]
        %v830 = vld [vmem:[%s1 + $0x38] sm:$0xff]
        %v831 = vld [vmem:[%s1 + $0x40] sm:$0xff]
        %v832 = vld [vmem:[%s1 + $0x48] sm:$0xff]
        %v833 = vld [vmem:[%s1 + $0x71] sm:$0x1]
        %v834 = vld [vmem:[%s1 + $0x50] sm:$0xff]
        %v835 = vld [vmem:[%s1 + $0x58] sm:$0xff]
        %v836 = vld [vmem:[%s1 + $0x60] sm:$0xff]
        %v837 = vld [vmem:[%s1 + $0x68] sm:$0xff]
        %v838 = vld [vmem:[%s1 + $0x72] sm:$0x1]
        %v839 = vld [vmem:[%s1 + $0x73] sm:$0x1]
        %v840 = vld [vmem:[%s1 + $0x74] sm:$0x1]
        %v841 = vlaneseq
        %v842 = vshrl.u32 %v841, 7
        %v843 = vsub.s32 0, %v842
        %v844 = vrot.slane %v833, %v843
        %vm845 = vcmask 523264
        %v847 = vsel %vm845, %v824, 0
        %849 = vmatprep.subr.mxu0 0.0
        %850 = vmatpush1.msra.mxu0 0.0
        %851 = vmatprep.subr.mxu0 0.0
        %852 = vmatpush1.msra.mxu0 0.0
        %853 = vmatprep.subr.mxu0 0.0
        %854 = vmatpush1.msra.mxu0 0.0
        %855 = vmatprep.subr.mxu0 0.0
        %856 = vmatpush1.msra.mxu0 0.0
        %857 = vmatprep.subr.mxu0 0.0
        %858 = vmatpush1.msra.mxu0 0.0
        %859 = vmatprep.subr.mxu0 0.0
        %860 = vmatpush1.msra.mxu0 0.0
        %861 = vmatprep.subr.mxu0 0.0
        %862 = vmatpush1.msra.mxu0 0.0
        %863 = vmatprep.subr.mxu0 0.0
        %864 = vmatpush1.msra.mxu0 0.0
        %865 = vmatprep.subr.mxu0 0.0
        %866 = vmatpush1.msra.mxu0 %v832
        %867 = vmatprep.subr.mxu0 0.0
        %868 = vmatpush1.msra.mxu0 %v831
        %869 = vmatprep.subr.mxu0 0.0
        %870 = vmatpush1.msra.mxu0 %v830
        %871 = vmatprep.subr.mxu0 0.0
        %872 = vmatpush1.msra.mxu0 %v829
        %873 = vmatprep.subr.mxu0 0.0
        %874 = vmatpush1.msra.mxu0 %v828
        %875 = vmatprep.subr.mxu0 0.0
        %876 = vmatpush1.msra.mxu0 %v827
        %877 = vmatprep.subr.mxu0 0.0
        %878 = vmatpush1.msra.mxu0 %v826
        %879 = vmatprep.subr.mxu0 0.0
        %880 = vmatpush1.msra.mxu0 %v825
        %881 = vmatprep.subr.mxu0 0.0
        %882 = vmatpush2.msra.mxu0 0.0
        %883 = vmatprep.subr.mxu0 0.0
        %884 = vmatpush2.msra.mxu0 0.0
        %885 = vmatprep.subr.mxu0 0.0
        %886 = vmatpush2.msra.mxu0 0.0
        %887 = vmatprep.subr.mxu0 0.0
        %888 = vmatpush2.msra.mxu0 0.0
        %889 = vmatprep.subr.mxu0 0.0
        %890 = vmatpush2.msra.mxu0 0.0
        %891 = vmatprep.subr.mxu0 0.0
        %892 = vmatpush2.msra.mxu0 0.0
        %893 = vmatprep.subr.mxu0 0.0
        %894 = vmatpush2.msra.mxu0 0.0
        %895 = vmatprep.subr.mxu0 0.0
        %896 = vmatpush2.msra.mxu0 0.0
        %897 = vmatprep.subr.mxu0 0.0
        %898 = vmatpush2.msra.mxu0 0.0
        %899 = vmatprep.subr.mxu0 0.0
        %900 = vmatpush2.msra.mxu0 0.0
        %901 = vmatprep.subr.mxu0 0.0
        %902 = vmatpush2.msra.mxu0 0.0
        %903 = vmatprep.subr.mxu0 0.0
        %904 = vmatpush2.msra.mxu0 0.0
        %905 = vmatprep.subr.mxu0 0.0
        %906 = vmatpush2.msra.mxu0 0.0
        %907 = vmatprep.subr.mxu0 0.0
        %908 = vmatpush2.msra.mxu0 0.0
        %909 = vmatprep.subr.mxu0 0.0
        %910 = vmatpush2.msra.mxu0 0.0
        %911 = vmatprep.subr.mxu0 0.0
        %912 = vmatpush2.msra.mxu0 0.0
        %913 = vmatprep.mubr.f32.mxu0 0.0
        %914 = vmatmul.mubr.f32.gmra.mxu0 %v847
        %v915 = vpop.f32.mrf.mxu0
        %v916 = vadd.f32 %v844, %v915
        %v917 = vpop.f32.mrf.mxu0
        %918 = vdwg.mxu0
        %v919 = vmax.f32 %v916, 0.0
        %v920 = vlaneseq
        %v921 = vshrl.u32 %v920, 7
        %v922 = vsub.s32 0, %v921
        %v923 = vrot.slane %v838, %v922
        %v925 = vsel %vm817, %v919, 0
        %927 = vmatprep.subr.mxu0 0.0
        %928 = vmatpush1.msra.mxu0 0.0
        %929 = vmatprep.subr.mxu0 0.0
        %930 = vmatpush1.msra.mxu0 0.0
        %931 = vmatprep.subr.mxu0 0.0
        %932 = vmatpush1.msra.mxu0 0.0
        %933 = vmatprep.subr.mxu0 0.0
        %934 = vmatpush1.msra.mxu0 0.0
        %935 = vmatprep.subr.mxu0 0.0
        %936 = vmatpush1.msra.mxu0 0.0
        %937 = vmatprep.subr.mxu0 0.0
        %938 = vmatpush1.msra.mxu0 0.0
        %939 = vmatprep.subr.mxu0 0.0
        %940 = vmatpush1.msra.mxu0 0.0
        %941 = vmatprep.subr.mxu0 0.0
        %942 = vmatpush1.msra.mxu0 0.0
        %943 = vmatprep.subr.mxu0 0.0
        %944 = vmatpush1.msra.mxu0 0.0
        %945 = vmatprep.subr.mxu0 0.0
        %946 = vmatpush1.msra.mxu0 0.0
        %947 = vmatprep.subr.mxu0 0.0
        %948 = vmatpush1.msra.mxu0 0.0
        %949 = vmatprep.subr.mxu0 0.0
        %950 = vmatpush1.msra.mxu0 0.0
        %951 = vmatprep.subr.mxu0 0.0
        %952 = vmatpush1.msra.mxu0 %v837
        %953 = vmatprep.subr.mxu0 0.0
        %954 = vmatpush1.msra.mxu0 %v836
        %955 = vmatprep.subr.mxu0 0.0
        %956 = vmatpush1.msra.mxu0 %v835
        %957 = vmatprep.subr.mxu0 0.0
        %958 = vmatpush1.msra.mxu0 %v834
        %959 = vmatprep.subr.mxu0 0.0
        %960 = vmatpush2.msra.mxu0 0.0
        %961 = vmatprep.subr.mxu0 0.0
        %962 = vmatpush2.msra.mxu0 0.0
        %963 = vmatprep.subr.mxu0 0.0
        %964 = vmatpush2.msra.mxu0 0.0
        %965 = vmatprep.subr.mxu0 0.0
        %966 = vmatpush2.msra.mxu0 0.0
        %967 = vmatprep.subr.mxu0 0.0
        %968 = vmatpush2.msra.mxu0 0.0
        %969 = vmatprep.subr.mxu0 0.0
        %970 = vmatpush2.msra.mxu0 0.0
        %971 = vmatprep.subr.mxu0 0.0
        %972 = vmatpush2.msra.mxu0 0.0
        %973 = vmatprep.subr.mxu0 0.0
        %974 = vmatpush2.msra.mxu0 0.0
        %975 = vmatprep.subr.mxu0 0.0
        %976 = vmatpush2.msra.mxu0 0.0
        %977 = vmatprep.subr.mxu0 0.0
        %978 = vmatpush2.msra.mxu0 0.0
        %979 = vmatprep.subr.mxu0 0.0
        %980 = vmatpush2.msra.mxu0 0.0
        %981 = vmatprep.subr.mxu0 0.0
        %982 = vmatpush2.msra.mxu0 0.0
        %983 = vmatprep.subr.mxu0 0.0
        %984 = vmatpush2.msra.mxu0 0.0
        %985 = vmatprep.subr.mxu0 0.0
        %986 = vmatpush2.msra.mxu0 0.0
        %987 = vmatprep.subr.mxu0 0.0
        %988 = vmatpush2.msra.mxu0 0.0
        %989 = vmatprep.subr.mxu0 0.0
        %990 = vmatpush2.msra.mxu0 0.0
        %991 = vmatprep.mubr.f32.mxu0 0.0
        %992 = vmatmul.mubr.f32.gmra.mxu0 %v925
        %v993 = vpop.f32.mrf.mxu0
        %v994 = vadd.f32 %v923, %v993
        %v995 = vpop.f32.mrf.mxu0
        %996 = vdwg.mxu0
        %v997 = vmax.f32 %v994, 0.0
        %v998 = vlaneseq
        %v999 = vshrl.u32 %v998, 7
        %v1000 = vsub.s32 0, %v999
        %v1001 = vrot.slane %v839, %v1000
        %v1002 = vmul.f32 %v997, %v1001
        %v1003 = vsel %vm813, %v1002, 0.0
        %1004 = vadd.xlane.f32.xlu0 %v1003
        %v1005 = vpop.xlane.xlu0 %1004
        %v1006 = vlaneseq
        %v1007 = vshrl.u32 %v1006, 7
        %v1008 = vsub.s32 0, %v1007
        %v1009 = vrot.slane %v840, %v1008
        %v1010 = vadd.f32 %v1005, %v1009
        %v1011 = vxor.u32 %v1010, 2147483648
        %v1012 = vmul.f32 %v1011, 1.442695
        %v1013 = vpow.pop %v1012
        %v1014 = vadd.f32 %v1013, 1.0
        %v1015 = vrcp.pop %v1014
        %v1016 = vmul.f32 1.0, %v1015
        %1018 = vset.pattern.permute.xlu0 0
        %1019 = vperm.xlu0 %1018, %v1016
        %v1020 = vpop.permute.xlu0 %1019
        %1022 = vst [vmem:[%s137] sm:$0xff] %v1020
        %s1023 = sand.u32 %s71, 1
        %s1024 = scalar_lea.sflag [#allocation3], %s1023
        %s1025 = sand.u32 %s71, 1
        %s1026 = smul.addr %s1025, 8
        %s1027 = scalar_lea.vmem [#allocation2], %s1026
        // Predicated region
        $region29: #{tpu_custom_call.1} parent=27 // pred_check
          %p1028 = pneg %p81
        $region30: #{tpu_custom_call.1} parent=27 // pred_check_branch
          %1030 = sbr.rel (%p1028) target = $region32
        $region31: #{tpu_custom_call.1} parent=27 // pred_region
          %s1032 = ssub.s32 128, 128
          %1033 = vsyncadd %s1024, %s1032
          %s1034 = smul.addr %s16, 128
          %s1035 = scalar_lea.hbm %s2, %s1034
          %s1037 = sshll.u32 %s1027, 4
          %s1038 = int_to_ptr.vmem [resolvable:$true] %s1037
          %1040 = dma.vmem_to_hbm [thread:$0]  %s1038, 128, %s1035, %s1024
        $region32: #{tpu_custom_call.1} parent=27 // pred_fallthru
          _
      $region28: #{tpu_custom_call.1} parent=5 // pred_fallthru
        _
      %p1041 = scmp.le.s32.totalorder 2, %s11
      // Predicated region
      $region33: #{tpu_custom_call.1} parent=5 // pred_check
        %p1042 = pneg %p1041
      $region34: #{tpu_custom_call.1} parent=5 // pred_check_branch
        %1044 = sbr.rel (%p1042) target = $region36
      $region35: #{tpu_custom_call.1} parent=5 // pred_region
        %s1045 = ssub.s32 %s11, 2
        // Predicated region
        $region37: #{tpu_custom_call.1} parent=35 // pred_check
          %p1046 = pneg %p87
        $region38: #{tpu_custom_call.1} parent=35 // pred_check_branch
          %1048 = sbr.rel (%p1046) target = $region40
        $region39: #{tpu_custom_call.1} parent=35 // pred_region
          %s1049 = sand.u32 %s72, 1
          %s1050 = scalar_lea.sflag [#allocation3], %s1049
          %s1051 = sand.u32 %s72, 1
          %s1052 = smul.addr %s1051, 8
          %s1053 = scalar_lea.vmem [#allocation2], %s1052
          %1054 = dma.done %s1050, 128
        $region40: #{tpu_custom_call.1} parent=35 // pred_fallthru
          _
      $region36: #{tpu_custom_call.1} parent=5 // pred_fallthru
        _
    $region6: #{tpu_custom_call.1} parent=1 // loop_footer
      %s15 = sadd.s32 1, %s11
    $region7: #{tpu_custom_call.1} parent=1 // loop_footer_branch
      %10 = sbr.rel target = $region3
    $region8: #{tpu_custom_call.1} parent=1 // loop_exit
      _
    %1055 = vsyncpa [#allocation3], 1
    %s1056 = scalar_lea.sflag [#allocation3], 1
    %1057 = vsyncpa %s1056, 1

</llo_original>
